<compile_context>
chip_gen: v7x
topology: tpu7x:2x2x1
jax: 0.10.0
libtpu: 0.0.40
codegen_flags: <defaults>
</compile_context>

<pallas_src>
import numpy as np
import jax
import jax.numpy as jnp
from jax.experimental import pallas as pl
from jax.experimental.pallas import tpu as pltpu

LANES = 128


def _round_up(x, m):
    return ((x + m - 1) // m) * m


def duffing_kernel(params_ref, x0_ref, x1_ref, u_ref, d0_ref, d1_ref):
    """Lane-dense elementwise Duffing-oscillator derivative kernel.

    params_ref : SMEM (4,)      f32 -> [alpha*scale, gamma*scale, beta*scale, scale]
    x0_ref     : VMEM (tr, 128) f32 -> position slab
    x1_ref     : VMEM (tr, 128) f32 -> velocity slab
    u_ref      : VMEM (tr, 128) f32 -> forcing slab
    d0_ref     : VMEM (tr, 128) f32 -> scale * d_x0/dt
    d1_ref     : VMEM (tr, 128) f32 -> scale * d_x1/dt
    """
    alpha_s = params_ref[0]   # alpha * scale
    gamma_s = params_ref[1]   # gamma * scale
    beta_s = params_ref[2]    # beta  * scale
    scale = params_ref[3]     # 1.0 (acceleration) or dt

    x0 = x0_ref[...]
    x1 = x1_ref[...]
    f = u_ref[...]

    d0_ref[...] = x1 * scale
    # scale * (-gamma*x1 - alpha*x0 - beta*x0**3 + f), Horner form in x0.
    d1_ref[...] = f * scale - gamma_s * x1 - x0 * (alpha_s + beta_s * (x0 * x0))


def duffing_forward(X, U, alpha, gamma, beta, dt,
                    output_format="acceleration", block_rows=512):
    """Wrapper: lane-dense repacking of the batch + gridded, pipelined Pallas call."""
    B = X.shape[0]
    scale = 1.0 if output_format == "acceleration" else float(dt)
    params = jnp.array(
        [float(alpha) * scale, float(gamma) * scale, float(beta) * scale, scale],
        dtype=jnp.float32)

    # Batch -> (rows, 128) slabs.  Last dim is always a multiple of 128 (lane-dense);
    # the row block is either the full row count (small B) or a multiple of 8.
    rows = _round_up(B, LANES) // LANES
    if rows <= block_rows:
        tr = rows                        # single block equal to full array dim (legal)
        rows_p = rows
    else:
        assert block_rows % 8 == 0, "block_rows must be a multiple of 8"
        tr = block_rows
        rows_p = _round_up(rows, tr)
    Bp = rows_p * LANES
    grid = (rows_p // tr,)

    def to_slab(col):
        return jnp.pad(col.astype(jnp.float32), (0, Bp - B)).reshape(rows_p, LANES)

    x0 = to_slab(X[:, 0])
    x1 = to_slab(X[:, 1])
    u = to_slab(U[:, 0])

    # index_map receives (grid_i, *scalar_prefetch_refs).
    slab_spec = pl.BlockSpec((tr, LANES), lambda i, params_ref: (i, 0))

    d0, d1 = pl.pallas_call(
        duffing_kernel,
        out_shape=(jax.ShapeDtypeStruct((rows_p, LANES), jnp.float32),
                   jax.ShapeDtypeStruct((rows_p, LANES), jnp.float32)),
        grid_spec=pltpu.PrefetchScalarGridSpec(
            num_scalar_prefetch=1,                  # params -> SMEM
            grid=grid,
            in_specs=[slab_spec, slab_spec, slab_spec],
            out_specs=(slab_spec, slab_spec),
        ),
        compiler_params=pltpu.CompilerParams(
            dimension_semantics=("parallel",),      # megacore sharding on v7x
        ),
    )(params, x0, x1, u)

    # Back to the module's (B, 2) layout (wrapper-side layout plumbing only).
    out = jnp.stack((d0.reshape(-1)[:B], d1.reshape(-1)[:B]), axis=1)
    return out


def init_parameters(seed=42):
    """Mirror the module's __init__: standardized value ~ N(0,1), then
    effective_param = mean + value * std (as in VehicleBase.get_parameter)."""
    # Synthetic replacement for the JSON parameter file: {name: (mean, std)}.
    global_params = {
        "alpha": (1.0, 0.1),
        "gamma": (0.2, 0.05),
        "beta": (0.5, 0.1),
    }
    np.random.seed(seed)
    effective = {}
    for name, (mean, std) in global_params.items():
        value = np.random.normal()  # standardized param value
        effective[name] = np.float32(mean + value * std)
    return effective


def reference_forward(X, U, alpha, gamma, beta, dt, output_format="acceleration"):
    x0 = X[:, 0:1]
    x1 = X[:, 1:2]
    d_x0 = x1
    d_x1 = -gamma * x1 - alpha * x0 - beta * x0 ** 3 + U
    out = jnp.concatenate((d_x0, d_x1), axis=1)
    if output_format == "acceleration":
        return out
    return out * dt


if __name__ == "__main__":
    dt = 0.01
    params = init_parameters(seed=42)
    alpha, gamma, beta = params["alpha"], params["gamma"], params["beta"]

    key = jax.random.PRNGKey(0)

    # Small case matching the module's online use (B=8) -> single (1, 128) block.
    kx, ku = jax.random.split(key)
    X = jax.random.normal(kx, (8, 2), dtype=jnp.float32)
    U = jax.random.normal(ku, (8, 1), dtype=jnp.float32)

    out_acc = jax.block_until_ready(
        duffing_forward(X, U, alpha, gamma, beta, dt, output_format="acceleration"))
    out_dt = jax.block_until_ready(
        duffing_forward(X, U, alpha, gamma, beta, dt, output_format="delta"))

    ref_acc = reference_forward(X, U, alpha, gamma, beta, dt, "acceleration")
    ref_dt = reference_forward(X, U, alpha, gamma, beta, dt, "delta")
    assert bool(jnp.allclose(out_acc, ref_acc, atol=1e-6)), "acceleration mismatch (B=8)"
    assert bool(jnp.allclose(out_dt, ref_dt, atol=1e-6)), "dt-scaled mismatch (B=8)"

    # Larger batch with a small block_rows to exercise the gridded, pipelined path.
    kx2, ku2 = jax.random.split(jax.random.PRNGKey(1))
    X2 = jax.random.normal(kx2, (2048, 2), dtype=jnp.float32)
    U2 = jax.random.normal(ku2, (2048, 1), dtype=jnp.float32)
    out2 = jax.block_until_ready(
        duffing_forward(X2, U2, alpha, gamma, beta, dt,
                        output_format="delta", block_rows=8))
    ref2 = reference_forward(X2, U2, alpha, gamma, beta, dt, "delta")
    assert bool(jnp.allclose(out2, ref2, atol=1e-6)), "gridded mismatch (B=2048)"

    print("KERNEL_OK")
</pallas_src>

<mosaic_0001>
module attributes {stable_mosaic.version = 11 : i64} {
  func.func @duffing_kernel(%arg0: i32, %arg1: memref<4xf32, #tpu.memory_space<smem>>, %arg2: memref<1x128xf32, #tpu.memory_space<vmem>>, %arg3: memref<1x128xf32, #tpu.memory_space<vmem>>, %arg4: memref<1x128xf32, #tpu.memory_space<vmem>>, %arg5: memref<1x128xf32, #tpu.memory_space<vmem>>, %arg6: memref<1x128xf32, #tpu.memory_space<vmem>>) attributes {dimension_semantics = [#tpu.dimension_semantics<parallel>], iteration_bounds = array<i64: 1>, scalar_prefetch = 1 : i64, scratch_operands = 0 : i64, tpu.core_type = #tpu.core_type<tc>, window_params = [{transform_indices = @transform_0, window_bounds = array<i64: 1, 128>}, {transform_indices = @transform_1, window_bounds = array<i64: 1, 128>}, {transform_indices = @transform_2, window_bounds = array<i64: 1, 128>}, {transform_indices = @transform_3, window_bounds = array<i64: 1, 128>}, {transform_indices = @transform_4, window_bounds = array<i64: 1, 128>}]} {
    %c0 = arith.constant 0 : index
    %0 = memref.load %arg1[%c0] : memref<4xf32, #tpu.memory_space<smem>>
    %c1 = arith.constant 1 : index
    %1 = memref.load %arg1[%c1] : memref<4xf32, #tpu.memory_space<smem>>
    %c2 = arith.constant 2 : index
    %2 = memref.load %arg1[%c2] : memref<4xf32, #tpu.memory_space<smem>>
    %c3 = arith.constant 3 : index
    %3 = memref.load %arg1[%c3] : memref<4xf32, #tpu.memory_space<smem>>
    %c0_0 = arith.constant 0 : index
    %c0_1 = arith.constant 0 : index
    %4 = vector.load %arg2[%c0_0, %c0_1] : memref<1x128xf32, #tpu.memory_space<vmem>>, vector<1x128xf32>
    %c0_2 = arith.constant 0 : index
    %c0_3 = arith.constant 0 : index
    %5 = vector.load %arg3[%c0_2, %c0_3] : memref<1x128xf32, #tpu.memory_space<vmem>>, vector<1x128xf32>
    %c0_4 = arith.constant 0 : index
    %c0_5 = arith.constant 0 : index
    %6 = vector.load %arg4[%c0_4, %c0_5] : memref<1x128xf32, #tpu.memory_space<vmem>>, vector<1x128xf32>
    %7 = vector.broadcast %3 : f32 to vector<1x128xf32>
    %8 = arith.mulf %5, %7 : vector<1x128xf32>
    %c0_6 = arith.constant 0 : index
    %c0_7 = arith.constant 0 : index
    %9 = vector.load %arg5[%c0_6, %c0_7] : memref<1x128xf32, #tpu.memory_space<vmem>>, vector<1x128xf32>
    tpu.vector_store %arg5[%c0_6, %c0_7], %8 {strides = array<i32>} : memref<1x128xf32, #tpu.memory_space<vmem>>, vector<1x128xf32>,
    %10 = vector.broadcast %3 : f32 to vector<1x128xf32>
    %11 = arith.mulf %6, %10 : vector<1x128xf32>
    %12 = vector.broadcast %1 : f32 to vector<1x128xf32>
    %13 = arith.mulf %12, %5 : vector<1x128xf32>
    %14 = arith.subf %11, %13 : vector<1x128xf32>
    %15 = arith.mulf %4, %4 : vector<1x128xf32>
    %16 = vector.broadcast %2 : f32 to vector<1x128xf32>
    %17 = arith.mulf %16, %15 : vector<1x128xf32>
    %18 = vector.broadcast %0 : f32 to vector<1x128xf32>
    %19 = arith.addf %18, %17 : vector<1x128xf32>
    %20 = arith.mulf %4, %19 : vector<1x128xf32>
    %21 = arith.subf %14, %20 : vector<1x128xf32>
    %c0_8 = arith.constant 0 : index
    %c0_9 = arith.constant 0 : index
    %22 = vector.load %arg6[%c0_8, %c0_9] : memref<1x128xf32, #tpu.memory_space<vmem>>, vector<1x128xf32>
    tpu.vector_store %arg6[%c0_8, %c0_9], %21 {strides = array<i32>} : memref<1x128xf32, #tpu.memory_space<vmem>>, vector<1x128xf32>,
    return
  }
  func.func @transform_0(%arg0: i32, %arg1: memref<4xf32, #tpu.memory_space<smem>>) -> (i32, i32) {
    %c0_i32 = arith.constant 0 : i32
    %c0_i32_0 = arith.constant 0 : i32
    return %arg0, %c0_i32 : i32, i32
  }
  func.func @transform_1(%arg0: i32, %arg1: memref<4xf32, #tpu.memory_space<smem>>) -> (i32, i32) {
    %c0_i32 = arith.constant 0 : i32
    %c0_i32_0 = arith.constant 0 : i32
    return %arg0, %c0_i32 : i32, i32
  }
  func.func @transform_2(%arg0: i32, %arg1: memref<4xf32, #tpu.memory_space<smem>>) -> (i32, i32) {
    %c0_i32 = arith.constant 0 : i32
    %c0_i32_0 = arith.constant 0 : i32
    return %arg0, %c0_i32 : i32, i32
  }
  func.func @transform_3(%arg0: i32, %arg1: memref<4xf32, #tpu.memory_space<smem>>) -> (i32, i32) {
    %c0_i32 = arith.constant 0 : i32
    %c0_i32_0 = arith.constant 0 : i32
    return %arg0, %c0_i32 : i32, i32
  }
  func.func @transform_4(%arg0: i32, %arg1: memref<4xf32, #tpu.memory_space<smem>>) -> (i32, i32) {
    %c0_i32 = arith.constant 0 : i32
    %c0_i32_0 = arith.constant 0 : i32
    return %arg0, %c0_i32 : i32, i32
  }
}

</mosaic_0001>

<llo_original>
// kernel: tpu_custom_call.1
$region0: #{tpu_custom_call.1}
  #allocation0 [shape = 'u32[]', space=smem, size = 0x4, offset = 0x4, fixed_abs, tag = 'smem constant byte address 0x4 - core index']
  #allocation1 [shape = 'u32[144,128]{1,0:T(1,128)}', space=vmem, size = 0x12000, scoped, tag = 'internal scratch']
  #allocation2 [shape = 's32[1]{0}', space=sflag, size = 0x4, scoped, tag = 'scoped memory for tpu_custom_call.1']
  #allocation3 [shape = 'u8[512]{0}', space=smem, size = 0x200, scoped, tag = 'prefetched SMEM operand 0']
  %s0 = inlined_call_operand.hbm [shape: f32[4], index: 0, kind: input, shape index: {}]
  %s1 = inlined_call_operand.vmem [shape: f32[1,128], index: 1, kind: input, shape index: {}]
  %s2 = inlined_call_operand.vmem [shape: f32[1,128], index: 2, kind: input, shape index: {}]
  %s3 = inlined_call_operand.vmem [shape: f32[1,128], index: 3, kind: input, shape index: {}]
  %s4 = inlined_call_operand.hbm [shape: f32[1,128], index: 4, kind: output, shape index: {0}]
  %s5 = inlined_call_operand.hbm [shape: f32[1,128], index: 5, kind: output, shape index: {1}]
  %6 = xla_tuple %s4, %s5
  %s7 = sld [smem:[#allocation0]]
  $region30: #{tpu_custom_call.1} parent=0
    _
  %s9 = ssub.s32 1, %s7
  %s10 = scalar_select 0, %s9, %s7
  %12 = dma.hbm_to_smem %s0, 16, [#allocation3], [#allocation2]
  %13 = dma.done [#allocation2], 16
  %14 = sfence
  $region1: #{tpu_custom_call.1} parent=0
    #allocation4 [shape = 'u8[512]{0}', space=vmem, size = 0x400, scoped, tag = 'output window, operand 0, single buffered']
    #allocation5 [shape = 's32[1]{0}', space=sflag, size = 0x4, scoped, tag = 'scoped memory for tpu_custom_call.1']
    #allocation6 [shape = 'u8[512]{0}', space=vmem, size = 0x400, scoped, tag = 'output window, operand 1, single buffered']
    #allocation7 [shape = 's32[1]{0}', space=sflag, size = 0x4, scoped, tag = 'scoped memory for tpu_custom_call.1']
    %15 = vsyncpa [#allocation5], 0
    %16 = vsyncpa [#allocation7], 0
    // Predicated region
    $region2: #{tpu_custom_call.1} parent=1 // pred_check
      _
    $region3: #{tpu_custom_call.1} parent=1 // pred_check_branch
      %18 = sbr.rel (0) target = $region5
    $region4: #{tpu_custom_call.1} parent=1 // pred_region
      _
    $region5: #{tpu_custom_call.1} parent=1 // pred_fallthru
      _
    // Predicated region
    $region6: #{tpu_custom_call.1} parent=1 // pred_check
      _
    $region7: #{tpu_custom_call.1} parent=1 // pred_check_branch
      %20 = sbr.rel (0) target = $region9
    $region8: #{tpu_custom_call.1} parent=1 // pred_region
      _
    $region9: #{tpu_custom_call.1} parent=1 // pred_fallthru
      _
    // Predicated region
    $region10: #{tpu_custom_call.1} parent=1 // pred_check
      _
    $region11: #{tpu_custom_call.1} parent=1 // pred_check_branch
      %22 = sbr.rel (0) target = $region13
    $region12: #{tpu_custom_call.1} parent=1 // pred_region
      _
    $region13: #{tpu_custom_call.1} parent=1 // pred_fallthru
      _
    %s23 = sld [smem:[#allocation3]]
    %s24 = sld [smem:[#allocation3 + $0x1]]
    %s25 = sld [smem:[#allocation3 + $0x2]]
    %s26 = sld [smem:[#allocation3 + $0x3]]
    %v27 = vld [vmem:[%s1] sm:$0x1]
    %v28 = vld [vmem:[%s2] sm:$0x1]
    %v29 = vld [vmem:[%s3] sm:$0x1]
    %v30 = vstv %s26
    %v31 = vmul.f32 %v28, %v30
    %32 = vst [vmem:[#allocation4] sm:$0x1] %v31
    %v33 = vmul.f32 %v29, %v30
    %v34 = vstv %s24
    %v35 = vmul.f32 %v34, %v28
    %v36 = vsub.f32 %v33, %v35
    %v37 = vmul.f32 %v27, %v27
    %v38 = vstv %s25
    %v39 = vmul.f32 %v38, %v37
    %v40 = vstv %s23
    %v41 = vadd.f32 %v40, %v39
    %v42 = vmul.f32 %v27, %v41
    %v43 = vsub.f32 %v36, %v42
    %44 = vst [vmem:[#allocation6] sm:$0x1] %v43
    // Predicated region
    $region14: #{tpu_custom_call.1} parent=1 // pred_check
      _
    $region15: #{tpu_custom_call.1} parent=1 // pred_check_branch
      %46 = sbr.rel (0) target = $region17
    $region16: #{tpu_custom_call.1} parent=1 // pred_region
      %s48 = ssub.s32 16, 16
      %49 = vsyncadd [#allocation5], %s48
      %s51 = sshll.u32 [#allocation4], 4
      %s52 = int_to_ptr.vmem [resolvable:$true] %s51
      %54 = dma.vmem_to_hbm [thread:$0]  %s52, 16, %s4, [#allocation5]
    $region17: #{tpu_custom_call.1} parent=1 // pred_fallthru
      _
    // Predicated region
    $region18: #{tpu_custom_call.1} parent=1 // pred_check
      _
    $region19: #{tpu_custom_call.1} parent=1 // pred_check_branch
      %56 = sbr.rel (0) target = $region21
    $region20: #{tpu_custom_call.1} parent=1 // pred_region
      %s58 = ssub.s32 16, 16
      %59 = vsyncadd [#allocation7], %s58
      %s61 = sshll.u32 [#allocation6], 4
      %s62 = int_to_ptr.vmem [resolvable:$true] %s61
      %64 = dma.vmem_to_hbm [thread:$0]  %s62, 16, %s5, [#allocation7]
    $region21: #{tpu_custom_call.1} parent=1 // pred_fallthru
      _
    // Predicated region
    $region22: #{tpu_custom_call.1} parent=1 // pred_check
      _
    $region23: #{tpu_custom_call.1} parent=1 // pred_check_branch
      %66 = sbr.rel (0) target = $region25
    $region24: #{tpu_custom_call.1} parent=1 // pred_region
      %67 = dma.done [#allocation5], 16
    $region25: #{tpu_custom_call.1} parent=1 // pred_fallthru
      _
    // Predicated region
    $region26: #{tpu_custom_call.1} parent=1 // pred_check
      _
    $region27: #{tpu_custom_call.1} parent=1 // pred_check_branch
      %69 = sbr.rel (0) target = $region29
    $region28: #{tpu_custom_call.1} parent=1 // pred_region
      %70 = dma.done [#allocation7], 16
    $region29: #{tpu_custom_call.1} parent=1 // pred_fallthru
      _
    %71 = vsyncpa [#allocation5], 1
    %72 = vsyncpa [#allocation7], 1

</llo_original>
